<compile_context>
chip_gen: v7x
topology: tpu7x:2x2x1
jax: 0.10.0
libtpu: 0.0.40
codegen_flags: <defaults>
</compile_context>

<pallas_src>
import functools

import jax
import jax.numpy as jnp
from jax.experimental import pallas as pl
from jax.experimental.pallas import tpu as pltpu


_OUT_LANES = 128  # lane-dense per-row-loss output tile (avoids masked partial stores)


def _confusion_kernel(xr_ref, xc_ref, o_ref, g_acc, *,
                      n_views, temperature, base_temperature):
    """Grid = (row blocks [parallel], K blocks [arbitrary / reduction])."""
    # NOTE: all program_id / num_programs reads happen at the TOP LEVEL of the kernel
    # body (never inside a pl.when branch) so both Mosaic and the interpret / CPU
    # fallback can handle them; the closures below only capture the resulting values.
    r = pl.program_id(0)
    k = pl.program_id(1)
    nk = pl.num_programs(1)

    @pl.when(k == 0)
    def _init():
        g_acc[...] = jnp.zeros_like(g_acc)

    # Hot loop: one NT matmul on the MXU (rows already normalized & cast in the wrapper),
    # f32 accumulation.  No transpose through the XLU, no per-tile casts, no side math.
    g_acc[...] += jax.lax.dot_general(
        xr_ref[...], xc_ref[...], (((1,), (1,)), ((), ())),
        preferred_element_type=jnp.float32)

    @pl.when(k == nk - 1)
    def _finalize():
        tr, n = g_acc.shape
        sim = g_acc[...] * jnp.float32(1.0 / temperature)                   # (tr, n)

        # Masks from a (tr,1) row-id iota and a (1,n) col-id iota via broadcasted
        # compares.  Sample bucket = id // n_views is done with the float-floor trick on
        # the tiny vectors (exact for ids < 2^23, checked in the wrapper) to avoid
        # relying on vector integer division.
        row_id = jax.lax.broadcasted_iota(jnp.int32, (tr, 1), 0) + r * tr   # (tr, 1)
        col_id = jax.lax.broadcasted_iota(jnp.int32, (1, n), 1)             # (1, n)
        inv_v = jnp.float32(1.0 / n_views)
        row_smp = jnp.floor((row_id.astype(jnp.float32) + 0.5) * inv_v)     # (tr, 1)
        col_smp = jnp.floor((col_id.astype(jnp.float32) + 0.5) * inv_v)     # (1, n)
        off_diag = row_id != col_id                                         # (tr, n)
        positives = jnp.logical_and(row_smp == col_smp, off_diag)           # (tr, n)

        # NOTE: no row-max subtraction before exp, matching the PyTorch reference exactly.
        denom = jnp.sum(jnp.where(off_diag, jnp.exp(sim), 0.0),
                        axis=1, keepdims=True)                              # (tr, 1)
        pos_sum = jnp.sum(jnp.where(positives, sim, 0.0),
                          axis=1, keepdims=True)                            # (tr, 1)
        # Each row has exactly (n_views - 1) positives, so
        #   mean_log_prob_pos = pos_sum / (n_views - 1) - log(denom)   (log_prob fused away).
        # Runtime division keeps the reference's NaN behavior for n_views == 1.
        mean_log_prob_pos = pos_sum / jnp.float32(n_views - 1) - jnp.log(denom)
        per_row = jnp.float32(-(temperature / base_temperature)) * mean_log_prob_pos
        o_ref[...] = jnp.broadcast_to(per_row, o_ref.shape)                 # lane-dense


def _vmem_capacity_bytes():
    try:
        info = pltpu.get_tpu_info()
        for name in ("vmem_capacity_bytes", "vmem_size_bytes", "vmem_bytes"):
            v = getattr(info, name, None)
            if v:
                return int(v)
    except Exception:
        pass
    return 64 * 1024 * 1024  # conservative per-core fallback (v7x)


def _largest_row_tile(n, cap):
    """Largest multiple-of-8 divisor of n that fits the VMEM-derived row cap.

    Prefers tiles that give an even number of row blocks (so the 'parallel' leading grid
    axis shards across both v7x TensorCores) as long as that costs at most 2x tile size.
    """
    if n % 8 != 0:
        return n                          # single full-height block (always shape-legal)
    cap = max(8, min(int(cap), n))
    divisors = [t for t in range(8, cap + 1, 8) if n % t == 0]
    if not divisors:
        return n
    best = max(divisors)
    even = [t for t in divisors if (n // t) % 2 == 0]
    if even and 2 * max(even) >= best:
        return max(even)
    return best


def _pick_k_tile(d):
    if d % 128 != 0:
        return d                          # single full-width K block (always shape-legal)
    for t in (512, 256, 128):             # 512/256 keep the 256-wide MXUs full; 128 for v5e
        if d % t == 0:
            return t
    return d


def _plan(n, d, itemsize):
    """Pick (row tile, K tile, vmem_limit) from a generation-aware VMEM budget."""
    cap = _vmem_capacity_bytes()
    budget = int(0.70 * cap)              # headroom for Mosaic internal scratch / spills

    def per_row(tk_cols):
        # VMEM bytes that scale with tr: double-buffered row panel + double-buffered
        # lane-dense output block + Gram-scratch row + generous epilogue-temporary
        # headroom (~6 live (tr, N) f32 panels during finalize).
        return 2 * tk_cols * itemsize + 2 * _OUT_LANES * 4 + n * 4 + 8 * n * 4

    fixed_res = 2 * n * d * itemsize      # resident column operand (2 buffers allocated)
    if fixed_res + 8 * per_row(d) <= budget:
        # Preferred: whole column operand resident in VMEM -> fetched from HBM once.
        tk = d
        fixed = fixed_res
        cap_tr = (budget - fixed) // per_row(d)
    else:
        # Fallback: stream (N, tk) column slabs (re-fetched per row block; HBM-bound).
        # TODO(synk): flash-style column tiling of the exp/log stage for very large N.
        tk = _pick_k_tile(d)
        fixed = 2 * n * tk * itemsize
        cap_tr = max(8, (budget - fixed) // per_row(tk))

    tr = _largest_row_tile(n, cap_tr)
    est = fixed + tr * per_row(tk)
    vmem_limit = int(min(0.9 * cap, max(32 * 1024 * 1024, 1.5 * est)))
    return tr, tk, vmem_limit


def confusion_loss(features, temperature=0.07, contrast_mode="all",
                   base_temperature=0.07, compute_dtype=jnp.bfloat16):
    """JAX/Pallas equivalent of ConFusionLoss.forward.

    features: [bsz, n_views, ...] (>= 3 dims); trailing dims are flattened.
    compute_dtype: MXU operand dtype (bf16 default; pass jnp.float32 for full fidelity at
      reduced throughput, e.g. for very small temperatures).
    Returns a scalar float32 loss.
    """
    del contrast_mode  # the reference forward() never branches on it
    if features.ndim < 3:
        raise ValueError("`features` needs to be [bsz, n_views, ...], "
                         "at least 3 dimensions are required")
    bsz, n_views = int(features.shape[0]), int(features.shape[1])
    n = bsz * n_views
    d = 1
    for s in features.shape[2:]:
        d *= int(s)
    if n >= (1 << 23):
        raise ValueError("bsz * n_views must stay below 2**23 (float-exact row ids)")

    # Sample-major row order: row i -> (sample i // n_views, view i % n_views).  This is a
    # pure permutation of the reference's view-major ordering; the loss is invariant.
    xf = features.reshape(n, d).astype(jnp.float32)
    # F.normalize(dim=1): x / max(||x||, 1e-12), done once in f32; then a single cast so
    # the kernel's hot loop is a pure MXU matmul (no per-tile casts / norm accumulators).
    inv_norm = jax.lax.rsqrt(jnp.maximum(
        jnp.sum(xf * xf, axis=-1, keepdims=True), 1e-24))
    x = (xf * inv_norm).astype(compute_dtype)

    itemsize = jnp.dtype(compute_dtype).itemsize
    tr, tk, vmem_limit = _plan(n, d, itemsize)
    num_r = n // tr
    num_k = d // tk

    kernel = functools.partial(
        _confusion_kernel, n_views=n_views,
        temperature=float(temperature), base_temperature=float(base_temperature))

    out = pl.pallas_call(
        kernel,
        out_shape=jax.ShapeDtypeStruct((n, _OUT_LANES), jnp.float32),
        grid=(num_r, num_k),
        in_specs=[
            pl.BlockSpec((tr, tk), lambda r, k: (r, k)),   # row panel of X (streamed)
            pl.BlockSpec((n, tk), lambda r, k: (0, k)),    # column operand (VMEM-resident
                                                           # when tk == d: index never changes)
        ],
        out_specs=pl.BlockSpec((tr, _OUT_LANES), lambda r, k: (r, 0)),
        scratch_shapes=[pltpu.VMEM((tr, n), jnp.float32)],  # Gram panel accumulator
        compiler_params=pltpu.CompilerParams(
            dimension_semantics=("parallel", "arbitrary"),
            vmem_limit_bytes=vmem_limit),
    )(x, x)

    # .view(anchor_count, batch_size).mean() == mean over all N per-row losses.
    return jnp.mean(out[:, 0])


def confusion_loss_ref(features, temperature=0.07, base_temperature=0.07):
    """Pure-JAX reference mirroring the PyTorch code, for validation."""
    bsz, n_views = features.shape[0], features.shape[1]
    feats = features.reshape(bsz, n_views, -1).astype(jnp.float32)
    d = feats.shape[-1]
    n = bsz * n_views
    contrast = jnp.transpose(feats, (1, 0, 2)).reshape(n, d)
    contrast = contrast / jnp.maximum(
        jnp.linalg.norm(contrast, axis=1, keepdims=True), 1e-12)
    sim = (contrast @ contrast.T) / temperature
    mask = jnp.tile(jnp.eye(bsz, dtype=jnp.float32), (n_views, n_views))
    logits_mask = 1.0 - jnp.eye(n, dtype=jnp.float32)
    mask = mask * logits_mask
    exp_logits = jnp.exp(sim) * logits_mask
    log_prob = sim - jnp.log(exp_logits.sum(1, keepdims=True))
    mean_log_prob_pos = (mask * log_prob).sum(1) / mask.sum(1)
    loss = -(temperature / base_temperature) * mean_log_prob_pos
    return loss.reshape(n_views, bsz).mean()


if __name__ == "__main__":
    # bsz=8, n_views=2, per-view feature map 6x64 -> D=384, N=16.
    # Planner picks the resident path: tr=8 (2 parallel row blocks), tk=D (num_k=1).
    key = jax.random.PRNGKey(0)
    features = jax.random.normal(key, (8, 2, 6, 64), dtype=jnp.float32)

    loss = jax.block_until_ready(confusion_loss(features))
    ref = jax.block_until_ready(confusion_loss_ref(features))

    assert jnp.isfinite(loss), "loss is not finite"
    err = abs(float(loss) - float(ref))
    tol = 2e-2 + 2e-2 * abs(float(ref))   # bf16 MXU operands => small numeric delta vs f32 ref
    assert err < tol, (float(loss), float(ref), err)

    print("KERNEL_OK")
</pallas_src>

<mosaic_0001>
module attributes {stable_mosaic.version = 11 : i64} {
  func.func @_confusion_kernel(%arg0: i32, %arg1: i32, %arg2: memref<8x384xbf16, #tpu.memory_space<vmem>>, %arg3: memref<16x384xbf16, #tpu.memory_space<vmem>>, %arg4: memref<8x128xf32, #tpu.memory_space<vmem>>, %arg5: memref<8x16xf32, #tpu.memory_space<vmem>>) attributes {dimension_semantics = [#tpu.dimension_semantics<parallel>, #tpu.dimension_semantics<arbitrary>], iteration_bounds = array<i64: 2, 1>, scalar_prefetch = 0 : i64, scratch_operands = 1 : i64, tpu.core_type = #tpu.core_type<tc>, window_params = [{transform_indices = @transform_0, window_bounds = array<i64: 8, 384>}, {transform_indices = @transform_1, window_bounds = array<i64: 16, 384>}, {transform_indices = @transform_2, window_bounds = array<i64: 8, 128>}]} {
    %c0_i32 = arith.constant 0 : i32
    %0 = arith.cmpi eq, %arg1, %c0_i32 : i32
    %1 = arith.extui %0 : i1 to i32
    %c0_i32_0 = arith.constant 0 : i32
    %2 = arith.cmpi ne, %1, %c0_i32_0 : i32
    scf.if %2 {
      %cst_10 = arith.constant 0.000000e+00 : f32
      %12 = vector.broadcast %cst_10 : f32 to vector<8x16xf32>
      %c0_11 = arith.constant 0 : index
      %c0_12 = arith.constant 0 : index
      %13 = vector.load %arg5[%c0_11, %c0_12] : memref<8x16xf32, #tpu.memory_space<vmem>>, vector<8x16xf32>
      tpu.vector_store %arg5[%c0_11, %c0_12], %12 {strides = array<i32>} : memref<8x16xf32, #tpu.memory_space<vmem>>, vector<8x16xf32>,
    } else {
    }
    %c0 = arith.constant 0 : index
    %c0_1 = arith.constant 0 : index
    %3 = vector.load %arg5[%c0, %c0_1] : memref<8x16xf32, #tpu.memory_space<vmem>>, vector<8x16xf32>
    %c0_2 = arith.constant 0 : index
    %c0_3 = arith.constant 0 : index
    %4 = vector.load %arg2[%c0_2, %c0_3] : memref<8x384xbf16, #tpu.memory_space<vmem>>, vector<8x384xbf16>
    %c0_4 = arith.constant 0 : index
    %c0_5 = arith.constant 0 : index
    %5 = vector.load %arg3[%c0_4, %c0_5] : memref<16x384xbf16, #tpu.memory_space<vmem>>, vector<16x384xbf16>
    %cst = arith.constant dense<0.000000e+00> : vector<8x16xf32>
    %6 = tpu.matmul %4, %5, %cst {dimension_numbers = #tpu.dot_dimension_numbers<[1], [1], [0], [0], [0, 0, 1, 0], [], []>} : vector<8x384xbf16>, vector<16x384xbf16>, vector<8x16xf32> -> vector<8x16xf32>
    %7 = arith.addf %3, %6 : vector<8x16xf32>
    %c0_6 = arith.constant 0 : index
    %c0_7 = arith.constant 0 : index
    %8 = vector.load %arg5[%c0_6, %c0_7] : memref<8x16xf32, #tpu.memory_space<vmem>>, vector<8x16xf32>
    tpu.vector_store %arg5[%c0_6, %c0_7], %7 {strides = array<i32>} : memref<8x16xf32, #tpu.memory_space<vmem>>, vector<8x16xf32>,
    %c0_i32_8 = arith.constant 0 : i32
    %9 = arith.cmpi eq, %arg1, %c0_i32_8 : i32
    %10 = arith.extui %9 : i1 to i32
    %c0_i32_9 = arith.constant 0 : i32
    %11 = arith.cmpi ne, %10, %c0_i32_9 : i32
    scf.if %11 {
      %c0_10 = arith.constant 0 : index
      %c0_11 = arith.constant 0 : index
      %12 = vector.load %arg5[%c0_10, %c0_11] : memref<8x16xf32, #tpu.memory_space<vmem>>, vector<8x16xf32>
      %cst_12 = arith.constant 14.2857141 : f32
      %13 = vector.broadcast %cst_12 : f32 to vector<8x16xf32>
      %14 = arith.mulf %12, %13 : vector<8x16xf32>
      %15 = tpu.iota {dimensions = array<i32: 0>} : vector<8x1xi32>
      %c8_i32 = arith.constant 8 : i32
      %16 = arith.muli %arg0, %c8_i32 : i32
      %17 = vector.broadcast %16 : i32 to vector<8x1xi32>
      %18 = arith.addi %15, %17 : vector<8x1xi32>
      %19 = tpu.iota {dimensions = array<i32: 1>} : vector<1x16xi32>
      %20 = arith.sitofp %18 : vector<8x1xi32> to vector<8x1xf32>
      %cst_13 = arith.constant 5.000000e-01 : f32
      %21 = vector.broadcast %cst_13 : f32 to vector<8x1xf32>
      %22 = arith.addf %20, %21 : vector<8x1xf32>
      %cst_14 = arith.constant 5.000000e-01 : f32
      %23 = vector.broadcast %cst_14 : f32 to vector<8x1xf32>
      %24 = arith.mulf %22, %23 : vector<8x1xf32>
      %25 = math.floor %24 : vector<8x1xf32>
      %26 = arith.sitofp %19 : vector<1x16xi32> to vector<1x16xf32>
      %cst_15 = arith.constant 5.000000e-01 : f32
      %27 = vector.broadcast %cst_15 : f32 to vector<1x16xf32>
      %28 = arith.addf %26, %27 : vector<1x16xf32>
      %cst_16 = arith.constant 5.000000e-01 : f32
      %29 = vector.broadcast %cst_16 : f32 to vector<1x16xf32>
      %30 = arith.mulf %28, %29 : vector<1x16xf32>
      %31 = math.floor %30 : vector<1x16xf32>
      %32 = vector.broadcast %18 : vector<8x1xi32> to vector<8x16xi32>
      %33 = vector.broadcast %19 : vector<1x16xi32> to vector<8x16xi32>
      %34 = arith.cmpi ne, %32, %33 : vector<8x16xi32>
      %35 = vector.broadcast %25 : vector<8x1xf32> to vector<8x16xf32>
      %36 = vector.broadcast %31 : vector<1x16xf32> to vector<8x16xf32>
      %37 = arith.cmpf oeq, %35, %36 : vector<8x16xf32>
      %38 = arith.andi %37, %34 : vector<8x16xi1>
      %39 = math.exp %14 : vector<8x16xf32>
      %cst_17 = arith.constant 0.000000e+00 : f32
      %40 = vector.broadcast %cst_17 : f32 to vector<8x16xf32>
      %41 = arith.select %34, %39, %40 : vector<8x16xi1>, vector<8x16xf32>
      %cst_18 = arith.constant dense<0.000000e+00> : vector<8xf32>
      %42 = vector.multi_reduction <add>, %41, %cst_18 [1] : vector<8x16xf32> to vector<8xf32>
      %43 = vector.shape_cast %42 : vector<8xf32> to vector<8x1xf32>
      %cst_19 = arith.constant 0.000000e+00 : f32
      %44 = vector.broadcast %cst_19 : f32 to vector<8x16xf32>
      %45 = arith.select %38, %14, %44 : vector<8x16xi1>, vector<8x16xf32>
      %cst_20 = arith.constant dense<0.000000e+00> : vector<8xf32>
      %46 = vector.multi_reduction <add>, %45, %cst_20 [1] : vector<8x16xf32> to vector<8xf32>
      %47 = vector.shape_cast %46 : vector<8xf32> to vector<8x1xf32>
      %cst_21 = arith.constant 1.000000e+00 : f32
      %48 = vector.broadcast %cst_21 : f32 to vector<8x1xf32>
      %49 = arith.divf %47, %48 : vector<8x1xf32>
      %50 = math.log %43 : vector<8x1xf32>
      %51 = arith.subf %49, %50 : vector<8x1xf32>
      %cst_22 = arith.constant -1.000000e+00 : f32
      %52 = vector.broadcast %cst_22 : f32 to vector<8x1xf32>
      %53 = arith.mulf %52, %51 : vector<8x1xf32>
      %54 = vector.shape_cast %53 : vector<8x1xf32> to vector<8x1xf32>
      %55 = vector.broadcast %54 : vector<8x1xf32> to vector<8x128xf32>
      %c0_23 = arith.constant 0 : index
      %c0_24 = arith.constant 0 : index
      %56 = vector.load %arg4[%c0_23, %c0_24] : memref<8x128xf32, #tpu.memory_space<vmem>>, vector<8x128xf32>
      tpu.vector_store %arg4[%c0_23, %c0_24], %55 {strides = array<i32>} : memref<8x128xf32, #tpu.memory_space<vmem>>, vector<8x128xf32>,
    } else {
    }
    return
  }
  func.func @transform_0(%arg0: i32, %arg1: i32) -> (i32, i32) {
    %c0_i32 = arith.constant 0 : i32
    return %arg0, %arg1 : i32, i32
  }
  func.func @transform_1(%arg0: i32, %arg1: i32) -> (i32, i32) {
    %c0_i32 = arith.constant 0 : i32
    %c0_i32_0 = arith.constant 0 : i32
    return %c0_i32, %arg1 : i32, i32
  }
  func.func @transform_2(%arg0: i32, %arg1: i32) -> (i32, i32) {
    %c0_i32 = arith.constant 0 : i32
    %c0_i32_0 = arith.constant 0 : i32
    return %arg0, %c0_i32 : i32, i32
  }
}

</mosaic_0001>

<llo_original>
// kernel: tpu_custom_call.1
$region0: #{tpu_custom_call.1}
  #allocation0 [shape = 'u32[]', space=smem, size = 0x4, offset = 0x4, fixed_abs, tag = 'smem constant byte address 0x4 - core index']
  #allocation1 [shape = 'u32[144,128]{1,0:T(1,128)}', space=vmem, size = 0x12000, scoped, tag = 'internal scratch']
  #allocation2 [shape = 'f32[8,16]{1,0:T(8,128)}', space=vmem, size = 0x1000, scoped, tag = 'scratch operand']
  %s0 = inlined_call_operand.hbm [shape: bf16[16,384], index: 0, kind: input, shape index: {}]
  %s1 = inlined_call_operand.hbm [shape: bf16[16,384], index: 1, kind: input, shape index: {}]
  %s2 = inlined_call_operand.hbm [shape: f32[16,128], index: 2, kind: output, shape index: {}]
  %s3 = sld [smem:[#allocation0]]
  $region57: #{tpu_custom_call.1} parent=0
    _
  %s5 = ssub.s32 1, %s3
  %s6 = scalar_select 0, %s5, %s3
  $region1: #{tpu_custom_call.1} parent=0
    #allocation3 [shape = 'u8[12288]{0}', space=vmem, size = 0x3000, scoped, tag = 'input window, operand 0']
    #allocation4 [shape = 's32[2]{0}', space=sflag, size = 0x8, scoped, tag = 'scoped memory for tpu_custom_call.1']
    #allocation5 [shape = 's32[2]{0}', space=sflag, size = 0x8, scoped, tag = 'scoped memory for tpu_custom_call.1']
    #allocation6 [shape = 'u8[12288]{0}', space=vmem, size = 0x3000, scoped, tag = 'input window, operand 1, single buffered']
    #allocation7 [shape = 's32[1]{0}', space=sflag, size = 0x4, scoped, tag = 'scoped memory for tpu_custom_call.1']
    #allocation8 [shape = 'u8[8192]{0}', space=vmem, size = 0x2000, scoped, tag = 'output window, operand 0']
    %7 = vsyncpa [#allocation4], 0
    %s8 = scalar_lea.sflag [#allocation4], 1
    %9 = vsyncpa %s8, 0
    %10 = vsyncpa [#allocation7], 0
    %11 = vsyncpa [#allocation5], 0
    %s12 = scalar_lea.sflag [#allocation5], 1
    %13 = vsyncpa %s12, 0
    loop: start=0, step=1, limit=4
    $region2: #{tpu_custom_call.1} parent=1 // loop_pre_header
      _
    $region3: #{tpu_custom_call.1} parent=1 // loop_header
      %s15 = sphi 0, %s19
      %p16 = scmp.ge.s32.totalorder %s15, 4
      %s22 = sphi 0, %s34
      %s23 = sphi 0, %s30
      %s24 = sphi 0, %s22
      %s25 = sphi 0, %s23
      %s26 = sphi 0, %s24
      %s27 = sphi 0, %s25
      %s39 = sphi 0, %s41
      %s42 = sphi 0, %s39
      %s43 = sphi 0, %s42
      %s59 = sphi 0, %s43
      %s65 = sphi 0, %s67
      %s68 = sphi 0, %s65
      %s69 = sphi 0, %s68
      %s85 = sphi 0, %s69
      %s91 = sphi 0, %s93
      %s94 = sphi 0, %s91
      %s95 = sphi 0, %s94
      %s111 = sphi 0, %s95
    $region4: #{tpu_custom_call.1} parent=1 // loop_header_branch
      %18 = sbr.rel (%p16) target = $region8
    $region5: #{tpu_custom_call.1} parent=1 // loop_body
      %s20 = ssub.s32 %s15, 1
      %s21 = ssub.s32 %s15, 2
      %s28 = sadd.s32 1, %s23
      %p29 = scmp.ge.s32.totalorder %s28, 1
      %s30 = scalar_select %p29, 0, %s28
      %s31 = sadd.s32 1, %s22
      %s32 = scalar_select %p29, %s31, %s22
      %p33 = scmp.ge.s32.totalorder %s32, 2
      %s34 = scalar_select %p33, 0, %s32
      %s35 = ssub.s32 %s22, %s34
      %s36 = ssub.s32 %s23, %s30
      %s37 = sor.u32 %s35, %s36
      %p38 = scmp.eq.s32.totalorder %s37, 0
      %s40 = sadd.s32 %s39, 1
      %s41 = scalar_select %p38, %s39, %s40
      %p44 = pneg %p38
      %p45 = scmp.eq.s32.totalorder %s15, 1
      %p46 = por %p44, %p45
      %p47 = scmp.ne.s32.totalorder %s39, %s42
      %p48 = scmp.eq.s32.totalorder %s15, 0
      %p49 = por %p47, %p48
      %p50 = scmp.ne.s32.totalorder %s39, %s42
      %p51 = scmp.eq.s32.totalorder %s20, 1
      %p52 = por %p50, %p51
      %p53 = scmp.ne.s32.totalorder %s42, %s43
      %p54 = scmp.eq.s32.totalorder %s20, 0
      %p55 = por %p53, %p54
      %p56 = scmp.ne.s32.totalorder %s42, %s43
      %p57 = scmp.eq.s32.totalorder %s21, 1
      %p58 = por %p56, %p57
      %p60 = scmp.ne.s32.totalorder %s43, %s59
      %p61 = scmp.eq.s32.totalorder %s21, 0
      %p62 = por %p60, %p61
      %s63 = ssub.s32 %s23, %s30
      %p64 = scmp.eq.s32.totalorder %s63, 0
      %s66 = sadd.s32 %s65, 1
      %s67 = scalar_select %p64, %s65, %s66
      %p70 = pneg %p64
      %p71 = scmp.eq.s32.totalorder %s15, 1
      %p72 = por %p70, %p71
      %p73 = scmp.ne.s32.totalorder %s65, %s68
      %p74 = scmp.eq.s32.totalorder %s15, 0
      %p75 = por %p73, %p74
      %p76 = scmp.ne.s32.totalorder %s65, %s68
      %p77 = scmp.eq.s32.totalorder %s20, 1
      %p78 = por %p76, %p77
      %p79 = scmp.ne.s32.totalorder %s68, %s69
      %p80 = scmp.eq.s32.totalorder %s20, 0
      %p81 = por %p79, %p80
      %p82 = scmp.ne.s32.totalorder %s68, %s69
      %p83 = scmp.eq.s32.totalorder %s21, 1
      %p84 = por %p82, %p83
      %p86 = scmp.ne.s32.totalorder %s69, %s85
      %p87 = scmp.eq.s32.totalorder %s21, 0
      %p88 = por %p86, %p87
      %s89 = ssub.s32 %s22, %s34
      %p90 = scmp.eq.s32.totalorder %s89, 0
      %s92 = sadd.s32 %s91, 1
      %s93 = scalar_select %p90, %s91, %s92
      %p96 = pneg %p90
      %p97 = scmp.eq.s32.totalorder %s15, 1
      %p98 = por %p96, %p97
      %p99 = scmp.ne.s32.totalorder %s91, %s94
      %p100 = scmp.eq.s32.totalorder %s15, 0
      %p101 = por %p99, %p100
      %p102 = scmp.ne.s32.totalorder %s91, %s94
      %p103 = scmp.eq.s32.totalorder %s20, 1
      %p104 = por %p102, %p103
      %p105 = scmp.ne.s32.totalorder %s94, %s95
      %p106 = scmp.eq.s32.totalorder %s20, 0
      %p107 = por %p105, %p106
      %p108 = scmp.ne.s32.totalorder %s94, %s95
      %p109 = scmp.eq.s32.totalorder %s21, 1
      %p110 = por %p108, %p109
      %p112 = scmp.ne.s32.totalorder %s95, %s111
      %p113 = scmp.eq.s32.totalorder %s21, 0
      %p114 = por %p112, %p113
      %p115 = scmp.le.s32.totalorder 1, %s15
      %p116 = scmp.lt.s32.totalorder %s15, 3
      %p117 = pnand %p115, %p116
      %p118 = pneg %p117
      // Predicated region
      $region9: #{tpu_custom_call.1} parent=5 // pred_check
        _
      $region10: #{tpu_custom_call.1} parent=5 // pred_check_branch
        %120 = sbr.rel (%p117) target = $region12
      $region11: #{tpu_custom_call.1} parent=5 // pred_region
        %s121 = ssub.s32 %s15, 1
        // Predicated region
        $region13: #{tpu_custom_call.1} parent=11 // pred_check
          %p122 = pneg %p81
        $region14: #{tpu_custom_call.1} parent=11 // pred_check_branch
          %124 = sbr.rel (%p122) target = $region16
        $region15: #{tpu_custom_call.1} parent=11 // pred_region
          %s125 = smul.u32 3, %s25
          %s127 = ssub.s32 384, 384
          %128 = vsyncadd [#allocation7], %s127
          %s129 = smul.addr %s125, 64
          %s130 = scalar_lea.hbm %s1, %s129
          %s131 = sshll.u32 [#allocation6], 4
          %s132 = int_to_ptr.vmem [resolvable:$true] %s131
          %137 = dma.hbm_to_vmem [thread:$0]  %s130, 384, %s132, [#allocation7], 192, 192, 12
        $region16: #{tpu_custom_call.1} parent=11 // pred_fallthru
          _
      $region12: #{tpu_custom_call.1} parent=5 // pred_fallthru
        _
      %p138 = scmp.lt.s32.totalorder %s15, 2
      // Predicated region
      $region17: #{tpu_custom_call.1} parent=5 // pred_check
        %p139 = pneg %p138
      $region18: #{tpu_custom_call.1} parent=5 // pred_check_branch
        %141 = sbr.rel (%p139) target = $region20
      $region19: #{tpu_custom_call.1} parent=5 // pred_region
        // Predicated region
        $region21: #{tpu_custom_call.1} parent=19 // pred_check
          %p142 = pneg %p49
        $region22: #{tpu_custom_call.1} parent=19 // pred_check_branch
          %144 = sbr.rel (%p142) target = $region24
        $region23: #{tpu_custom_call.1} parent=19 // pred_region
          %s145 = sand.u32 %s39, 1
          %s146 = scalar_lea.sflag [#allocation4], %s145
          %s147 = sand.u32 %s39, 1
          %s148 = smul.addr %s147, 12
          %s149 = scalar_lea.vmem [#allocation3], %s148
          %s150 = smul.u32 3, %s23
          %s152 = ssub.s32 192, 192
          %153 = vsyncadd %s146, %s152
          %s154 = smul.addr %s22, 3
          %s155 = sadd.s32 %s150, %s154
          %s156 = smul.addr %s155, 64
          %s157 = scalar_lea.hbm %s0, %s156
          %s159 = sshll.u32 %s149, 4
          %s160 = int_to_ptr.vmem [resolvable:$true] %s159
          %162 = dma.hbm_to_vmem [thread:$0]  %s157, 192, %s160, %s146
        $region24: #{tpu_custom_call.1} parent=19 // pred_fallthru
          _
      $region20: #{tpu_custom_call.1} parent=5 // pred_fallthru
        _
      %p163 = scmp.le.s32.totalorder 1, %s15
      %p164 = scmp.lt.s32.totalorder %s15, 3
      %p165 = pnand %p163, %p164
      %p166 = pneg %p165
      // Predicated region
      $region25: #{tpu_custom_call.1} parent=5 // pred_check
        _
      $region26: #{tpu_custom_call.1} parent=5 // pred_check_branch
        %168 = sbr.rel (%p165) target = $region28
      $region27: #{tpu_custom_call.1} parent=5 // pred_region
        %s169 = ssub.s32 %s15, 1
        %s170 = sand.u32 %s42, 1
        %s171 = scalar_lea.sflag [#allocation4], %s170
        %s172 = sand.u32 %s42, 1
        %s173 = smul.addr %s172, 12
        %s174 = scalar_lea.vmem [#allocation3], %s173
        // Predicated region
        $region29: #{tpu_custom_call.1} parent=27 // pred_check
          %p175 = pneg %p55
        $region30: #{tpu_custom_call.1} parent=27 // pred_check_branch
          %177 = sbr.rel (%p175) target = $region32
        $region31: #{tpu_custom_call.1} parent=27 // pred_region
          %178 = dma.done %s171, 192
        $region32: #{tpu_custom_call.1} parent=27 // pred_fallthru
          _
        // Predicated region
        $region33: #{tpu_custom_call.1} parent=27 // pred_check
          %p179 = pneg %p81
        $region34: #{tpu_custom_call.1} parent=27 // pred_check_branch
          %181 = sbr.rel (%p179) target = $region36
        $region35: #{tpu_custom_call.1} parent=27 // pred_region
          %182 = dma.done [#allocation7], 384
        $region36: #{tpu_custom_call.1} parent=27 // pred_fallthru
          _
        %s183 = sand.u32 %s42, 1
        %s184 = scalar_lea.sflag [#allocation4], %s183
        %s185 = sand.u32 %s42, 1
        %s186 = smul.addr %s185, 12
        %s187 = scalar_lea.vmem [#allocation3], %s186
        %p188 = pneg %p55
        %p189 = pneg %p52
        %p190 = pneg %p81
        %p191 = pneg %p78
        %p192 = pneg %p107
        %p193 = pneg %p104
        %s194 = sand.u32 %s94, 1
        %s195 = scalar_lea.sflag [#allocation5], %s194
        %s196 = sand.u32 %s94, 1
        %s197 = smul.addr %s196, 8
        %s198 = scalar_lea.vmem [#allocation8], %s197
        %s199 = smul.u32 3, %s25
        %s200 = smul.u32 3, %s25
        %p202 = scmp.eq.s32.totalorder %s25, 0
        // Predicated region
        $region37: #{tpu_custom_call.1} parent=27 // pred_check
          %p203 = pneg %p202
        $region38: #{tpu_custom_call.1} parent=27 // pred_check_branch
          %205 = sbr.rel (%p203) target = $region40
        $region39: #{tpu_custom_call.1} parent=27 // pred_region
          %vm206 = vcmask 130048
          %207 = vst.msk [vmem:[#allocation2] sm:$0xff] %vm206, 0.0
        $region40: #{tpu_custom_call.1} parent=27 // pred_fallthru
          _
        %v208 = vld [vmem:[#allocation2] sm:$0xff]
        %v209 = vld [vmem:[%s174] sm:$0xff]
        %v210 = vld [vmem:[%s174 + $0x8] sm:$0xf]
        %v211 = vld [vmem:[#allocation6] sm:$0xff]
        %v212 = vld [vmem:[#allocation6 + $0x8] sm:$0xf]
        %v213 = vld [vmem:[#allocation6 + $0xc] sm:$0xff]
        %v214 = vld [vmem:[#allocation6 + $0x14] sm:$0xf]
        %v217 = vunpack.c.l.b16 %v209
        %v218 = vunpack.c.h.b16 %v209
        %v219 = vunpack.c.l.b16 %v210
        %v220 = vpack.c.b16 %v217, %v217
        %v221 = vpack.c.b16 %v218, %v218
        %v222 = vpack.c.b16 %v219, %v219
        %v230 = vunpack.c.l.b16 %v211
        %v231 = vunpack.c.h.b16 %v211
        %v232 = vunpack.c.l.b16 %v212
        %v233 = vunpack.c.l.b16 %v213
        %v234 = vunpack.c.h.b16 %v213
        %v235 = vunpack.c.l.b16 %v214
        %v236 = vpack.c.b16 %v233, %v230
        %v237 = vpack.c.b16 %v234, %v231
        %v238 = vpack.c.b16 %v235, %v232
        %242 = vmatprep.subr.bf16.mxu0 %v237
        %243 = vmatpush1.bf16.xpose.msra.mxu0 %v236
        %244 = vmatprep.subr.bf16.mxu0 0
        %245 = vmatpush1.bf16.xpose.msra.mxu0 0
        %246 = vmatprep.subr.bf16.mxu0 0
        %247 = vmatpush1.bf16.xpose.msra.mxu0 0
        %248 = vmatprep.subr.bf16.mxu0 0
        %249 = vmatpush1.bf16.xpose.msra.mxu0 0
        %250 = vmatprep.subr.bf16.mxu0 0
        %251 = vmatpush1.bf16.xpose.msra.mxu0 0
        %252 = vmatprep.subr.bf16.mxu0 0
        %253 = vmatpush1.bf16.xpose.msra.mxu0 0
        %254 = vmatprep.subr.bf16.mxu0 0
        %255 = vmatpush1.bf16.xpose.msra.mxu0 0
        %256 = vmatprep.subr.bf16.mxu0 0
        %257 = vmatpush1.bf16.xpose.msra.mxu0 0
        %258 = vmatprep.subr.bf16.mxu0 0
        %259 = vmatpush1.bf16.xpose.msra.mxu0 0
        %260 = vmatprep.subr.bf16.mxu0 0
        %261 = vmatpush1.bf16.xpose.msra.mxu0 0
        %262 = vmatprep.subr.bf16.mxu0 0
        %263 = vmatpush1.bf16.xpose.msra.mxu0 0
        %264 = vmatprep.subr.bf16.mxu0 0
        %265 = vmatpush1.bf16.xpose.msra.mxu0 0
        %266 = vmatprep.subr.bf16.mxu0 0
        %267 = vmatpush1.bf16.xpose.msra.mxu0 0
        %268 = vmatprep.subr.bf16.mxu0 0
        %269 = vmatpush1.bf16.xpose.msra.mxu0 0
        %270 = vmatprep.subr.bf16.mxu0 0
        %271 = vmatpush1.bf16.xpose.msra.mxu0 0
        %272 = vmatprep.subr.bf16.mxu0 0
        %273 = vmatpush1.bf16.xpose.msra.mxu0 0
        %274 = vmatprep.mubr.bf16.mxu0 %v221
        %275 = vmatmul.mubr.bf16.gmra.mrb[0].mxu0 %v220
        %v276 = vpop.f32.mrb[0].mxu0
        %v277 = vadd.f32 0.0, %v276
        %v278 = vpop.f32.mrb[0].mxu0
        %v279 = vpop.f32.mrb[0].mxu0
        %v280 = vpop.f32.mrb[0].mxu0
        %281 = vdwg.mxu0
        %282 = vmatprep.subr.bf16.mxu0 0
        %283 = vmatpush1.bf16.xpose.msra.mxu0 %v238
        %284 = vmatprep.subr.bf16.mxu0 0
        %285 = vmatpush1.bf16.xpose.msra.mxu0 0
        %286 = vmatprep.subr.bf16.mxu0 0
        %287 = vmatpush1.bf16.xpose.msra.mxu0 0
        %288 = vmatprep.subr.bf16.mxu0 0
        %289 = vmatpush1.bf16.xpose.msra.mxu0 0
        %290 = vmatprep.subr.bf16.mxu0 0
        %291 = vmatpush1.bf16.xpose.msra.mxu0 0
        %292 = vmatprep.subr.bf16.mxu0 0
        %293 = vmatpush1.bf16.xpose.msra.mxu0 0
        %294 = vmatprep.subr.bf16.mxu0 0
        %295 = vmatpush1.bf16.xpose.msra.mxu0 0
        %296 = vmatprep.subr.bf16.mxu0 0
        %297 = vmatpush1.bf16.xpose.msra.mxu0 0
        %298 = vmatprep.subr.bf16.mxu0 0
        %299 = vmatpush1.bf16.xpose.msra.mxu0 0
        %300 = vmatprep.subr.bf16.mxu0 0
        %301 = vmatpush1.bf16.xpose.msra.mxu0 0
        %302 = vmatprep.subr.bf16.mxu0 0
        %303 = vmatpush1.bf16.xpose.msra.mxu0 0
        %304 = vmatprep.subr.bf16.mxu0 0
        %305 = vmatpush1.bf16.xpose.msra.mxu0 0
        %306 = vmatprep.subr.bf16.mxu0 0
        %307 = vmatpush1.bf16.xpose.msra.mxu0 0
        %308 = vmatprep.subr.bf16.mxu0 0
        %309 = vmatpush1.bf16.xpose.msra.mxu0 0
        %310 = vmatprep.subr.bf16.mxu0 0
        %311 = vmatpush1.bf16.xpose.msra.mxu0 0
        %312 = vmatprep.subr.bf16.mxu0 0
        %313 = vmatpush1.bf16.xpose.msra.mxu0 0
        %314 = vmatprep.mubr.bf16.mxu0 0
        %315 = vmatmul.mubr.bf16.gmra.mrb[0].mxu0 %v222
        %v316 = vpop.f32.mrb[0].mxu0
        %v317 = vadd.f32 %v277, %v316
        %v318 = vpop.f32.mrb[0].mxu0
        %v319 = vpop.f32.mrb[0].mxu0
        %v320 = vpop.f32.mrb[0].mxu0
        %321 = vdwg.mxu0
        %v322 = vadd.f32 %v208, %v317
        %vm323 = vcmask 130048
        %324 = vst.msk [vmem:[#allocation2] sm:$0xff] %vm323, %v322
        // Predicated region
        $region41: #{tpu_custom_call.1} parent=27 // pred_check
          %p325 = pneg %p202
        $region42: #{tpu_custom_call.1} parent=27 // pred_check_branch
          %327 = sbr.rel (%p325) target = $region44
        $region43: #{tpu_custom_call.1} parent=27 // pred_region
          %v328 = vld [vmem:[#allocation2] sm:$0xff]
          %v329 = vmul.f32 %v328, 14.285714
          %v330 = vlaneseq
          %v331 = vshrl.u32 %v330, 7
          %s332 = smul.u32 %s24, 8
          %v333 = vstv %s332
          %v334 = vadd.s32 %v331, %v333
          %v335 = vlaneseq
          %v336 = vand.u32 %v335, 127
          %v337 = vcvt.s32.f32 %v334
          %v338 = vadd.f32 %v337, 0.5
          %v339 = vmul.f32 %v338, 0.5
          %v340 = vfloor.f32 %v339
          %v341 = vcvt.s32.f32 %v336
          %v342 = vadd.f32 %v341, 0.5
          %v343 = vmul.f32 %v342, 0.5
          %v344 = vfloor.f32 %v343
          %vm345 = vcmp.ne.s32.totalorder %v334, %v336
          %vm346 = vcmp.eq.f32.partialorder %v340, %v344
          %vm347 = vmand %vm346, %vm345
          %v348 = vmul.f32 %v329, 1.442695
          %v349 = vpow.pop %v348
          %v350 = vsel %vm345, %v349, 0.0
          %v351 = vsel %vm323, %v350, 0.0
          %352 = vadd.xlane.f32.xlu0 %v351
          %v353 = vpop.xlane.xlu0 %352
          %v354 = vsel %vm347, %v329, 0.0
          %v355 = vsel %vm323, %v354, 0.0
          %356 = vadd.xlane.f32.xlu0 %v355
          %v357 = vpop.xlane.xlu0 %356
          %v358 = vlog2.pop %v353
          %v359 = vmul.f32 %v358, 0.6931472
          %v360 = vsub.f32 %v357, %v359
          %v361 = vmul.f32 %v360, -1.0
          %362 = vst [vmem:[%s198] sm:$0xff] %v361
        $region44: #{tpu_custom_call.1} parent=27 // pred_fallthru
          _
        %s363 = sand.u32 %s94, 1
        %s364 = scalar_lea.sflag [#allocation5], %s363
        %s365 = sand.u32 %s94, 1
        %s366 = smul.addr %s365, 8
        %s367 = scalar_lea.vmem [#allocation8], %s366
        // Predicated region
        $region45: #{tpu_custom_call.1} parent=27 // pred_check
          %p368 = pneg %p104
        $region46: #{tpu_custom_call.1} parent=27 // pred_check_branch
          %370 = sbr.rel (%p368) target = $region48
        $region47: #{tpu_custom_call.1} parent=27 // pred_region
          %s372 = ssub.s32 128, 128
          %373 = vsyncadd %s364, %s372
          %s374 = smul.addr %s24, 128
          %s375 = scalar_lea.hbm %s2, %s374
          %s377 = sshll.u32 %s367, 4
          %s378 = int_to_ptr.vmem [resolvable:$true] %s377
          %380 = dma.vmem_to_hbm [thread:$0]  %s378, 128, %s375, %s364
        $region48: #{tpu_custom_call.1} parent=27 // pred_fallthru
          _
      $region28: #{tpu_custom_call.1} parent=5 // pred_fallthru
        _
      %p381 = scmp.le.s32.totalorder 2, %s15
      // Predicated region
      $region49: #{tpu_custom_call.1} parent=5 // pred_check
        %p382 = pneg %p381
      $region50: #{tpu_custom_call.1} parent=5 // pred_check_branch
        %384 = sbr.rel (%p382) target = $region52
      $region51: #{tpu_custom_call.1} parent=5 // pred_region
        %s385 = ssub.s32 %s15, 2
        // Predicated region
        $region53: #{tpu_custom_call.1} parent=51 // pred_check
          %p386 = pneg %p110
        $region54: #{tpu_custom_call.1} parent=51 // pred_check_branch
          %388 = sbr.rel (%p386) target = $region56
        $region55: #{tpu_custom_call.1} parent=51 // pred_region
          %s389 = sand.u32 %s95, 1
          %s390 = scalar_lea.sflag [#allocation5], %s389
          %s391 = sand.u32 %s95, 1
          %s392 = smul.addr %s391, 8
          %s393 = scalar_lea.vmem [#allocation8], %s392
          %394 = dma.done %s390, 128
        $region56: #{tpu_custom_call.1} parent=51 // pred_fallthru
          _
      $region52: #{tpu_custom_call.1} parent=5 // pred_fallthru
        _
    $region6: #{tpu_custom_call.1} parent=1 // loop_footer
      %s19 = sadd.s32 1, %s15
    $region7: #{tpu_custom_call.1} parent=1 // loop_footer_branch
      %14 = sbr.rel target = $region3
    $region8: #{tpu_custom_call.1} parent=1 // loop_exit
      _
    %395 = vsyncpa [#allocation4], 1
    %s396 = scalar_lea.sflag [#allocation4], 1
    %397 = vsyncpa %s396, 1
    %398 = vsyncpa [#allocation7], 1
    %399 = vsyncpa [#allocation5], 1
    %s400 = scalar_lea.sflag [#allocation5], 1
    %401 = vsyncpa %s400, 1

</llo_original>
